<compile_context>
chip_gen: v7x
topology: tpu7x:2x2x1
jax: 0.10.0
libtpu: 0.0.40
codegen_flags: <defaults>
</compile_context>

<pallas_src>
import functools
import math

import jax
import jax.numpy as jnp
import numpy as np
from jax import lax
from jax.experimental import pallas as pl
from jax.experimental.pallas import tpu as pltpu

LANE = 128
BIG = 1e30


# ---------------------------------------------------------------------------
# small helpers
# ---------------------------------------------------------------------------
def _round_up(x, m):
    return ((x + m - 1) // m) * m


def _pick_tile(dim, candidates):
    for t in candidates:
        if t <= dim and dim % t == 0:
            return t
    return dim


def _pad2d(x, rows, cols):
    r, c = x.shape
    if r == rows and c == cols:
        return x
    return jnp.pad(x, ((0, rows - r), (0, cols - c)))


# ---------------------------------------------------------------------------
# Kernel 1: fused dense layer  Y = [relu](X @ W + b)   (tiled M x N x K matmul)
# ---------------------------------------------------------------------------
def _linear_kernel(x_ref, w_ref, b_ref, o_ref, acc_ref, *, apply_relu):
    @pl.when(pl.program_id(2) == 0)
    def _init():
        acc_ref[...] = jnp.zeros_like(acc_ref)

    acc_ref[...] += jnp.dot(x_ref[...], w_ref[...],
                            preferred_element_type=jnp.float32)

    @pl.when(pl.program_id(2) == pl.num_programs(2) - 1)
    def _fin():
        y = acc_ref[...] + b_ref[...]
        if apply_relu:
            y = jnp.maximum(y, 0.0)
        o_ref[...] = y.astype(o_ref.dtype)


def linear_pallas(x, w, b, *, apply_relu, compute_dtype, out_dtype):
    """x: (N, K), w: (K, C), b: (C,)  ->  (N, C) = [relu](x @ w + b)."""
    N, K = x.shape
    C = w.shape[1]
    Kp = _round_up(K, LANE)
    Cp = _round_up(C, LANE)
    tm = min(512, _round_up(N, 8))
    Np = _round_up(N, tm)
    tk = _pick_tile(Kp, (512, 384, 256, 128))
    tn = _pick_tile(Cp, (256, 128))

    xp = _pad2d(x.astype(compute_dtype), Np, Kp)
    wp = _pad2d(w.astype(compute_dtype), Kp, Cp)
    bp = _pad2d(b.reshape(1, C).astype(jnp.float32), 1, Cp)

    isz = xp.dtype.itemsize
    est = (2 * (tm * tk * isz + tk * tn * isz + tn * 4)
           + 2 * tm * tn * 4 + tm * tn * 4)
    vmem_limit = int(min(48 * 2**20, max(4 * est, 8 * 2**20)))

    out = pl.pallas_call(
        functools.partial(_linear_kernel, apply_relu=apply_relu),
        out_shape=jax.ShapeDtypeStruct((Np, Cp), out_dtype),
        grid=(Np // tm, Cp // tn, Kp // tk),
        in_specs=[
            pl.BlockSpec((tm, tk), lambda i, j, k: (i, k)),
            pl.BlockSpec((tk, tn), lambda i, j, k: (k, j)),
            pl.BlockSpec((1, tn), lambda i, j, k: (0, j)),
        ],
        out_specs=pl.BlockSpec((tm, tn), lambda i, j, k: (i, j)),
        scratch_shapes=[pltpu.VMEM((tm, tn), jnp.float32)],
        compiler_params=pltpu.CompilerParams(
            dimension_semantics=("parallel", "parallel", "arbitrary"),
            vmem_limit_bytes=vmem_limit),
    )(xp, wp, bp)
    return out[:N, :C]


# ---------------------------------------------------------------------------
# Kernel 2: fused 5-head MLP + gaussian parameter update
#   deltas = (relu(x @ W1_all + b1_all)) @ W2_blockdiag + b2_all
#   upd    = gauss + deltas * factor ; rot channels L2-normalized ; clamp(lo, hi)
# ---------------------------------------------------------------------------
def _heads_kernel(x_ref, w1_ref, b1_ref, w2_ref, b2_ref, g_ref,
                  fac_ref, lo_ref, hi_ref, rotm_ref, o_ref, *, compute_dtype):
    x = x_ref[...]
    h = jnp.dot(x, w1_ref[...], preferred_element_type=jnp.float32) + b1_ref[...]
    h = jnp.maximum(h, 0.0)
    d = jnp.dot(h.astype(compute_dtype), w2_ref[...],
                preferred_element_type=jnp.float32) + b2_ref[...]

    g = g_ref[...].astype(jnp.float32)
    upd = g + d * fac_ref[...]

    # quaternion normalize on rot channels only (F.normalize, eps=1e-12)
    rot_mask = rotm_ref[...] > 0.5                                    # (1, C)
    rot_sq = jnp.sum(jnp.where(rot_mask, upd * upd, 0.0),
                     axis=-1, keepdims=True)                          # (tm, 1)
    inv = 1.0 / jnp.maximum(jnp.sqrt(rot_sq), 1e-12)
    upd = jnp.where(rot_mask, upd * inv, upd)

    o_ref[...] = jnp.clip(upd, lo_ref[...], hi_ref[...]).astype(o_ref.dtype)


_HEADS = ("fc_position", "fc_rotation", "fc_color", "fc_scale", "fc_opacity")


def _pack_head_params(params):
    w1s, b1s, w2s, b2s, outs = [], [], [], [], []
    for name in _HEADS:
        w1, b1, w2, b2 = params[name]
        w1s.append(w1); b1s.append(b1); w2s.append(w2); b2s.append(b2)
        outs.append(int(w2.shape[1]))
    w1_all = jnp.concatenate(w1s, axis=1)                 # (H, 5*64)
    b1_all = jnp.concatenate(b1s, axis=0)
    hid = int(w1_all.shape[1])
    odim = int(sum(outs))
    w2_all = jnp.zeros((hid, odim), jnp.float32)          # block-diagonal
    b2_all = jnp.concatenate(b2s, axis=0)
    r = c = 0
    for w2, od in zip(w2s, outs):
        w2_all = w2_all.at[r:r + w2.shape[0], c:c + od].set(w2)
        r += w2.shape[0]
        c += od
    return w1_all, b1_all, w2_all, b2_all, outs


def _update_vectors(out_dims, cpad):
    d_pos, d_rot, d_col, d_scl, d_opa = out_dims
    fac = np.concatenate([np.full(d_pos, 0.1), np.ones(d_rot), np.ones(d_col),
                          np.full(d_scl, 0.1), np.ones(d_opa)])
    lo = np.concatenate([np.full(d_pos, -BIG), np.full(d_rot, -BIG),
                         np.zeros(d_col), np.full(d_scl, 1e-6), np.zeros(d_opa)])
    hi = np.concatenate([np.full(d_pos, BIG), np.full(d_rot, BIG),
                         np.ones(d_col), np.full(d_scl, 1000.0), np.ones(d_opa)])
    rotm = np.concatenate([np.zeros(d_pos), np.ones(d_rot),
                           np.zeros(d_col + d_scl + d_opa)])

    def pad(v):
        return jnp.asarray(np.pad(v, (0, cpad - v.size)), jnp.float32).reshape(1, cpad)

    return pad(fac), pad(lo), pad(hi), pad(rotm)


def heads_update_pallas(h, gaussians, params, *, compute_dtype):
    N, H = h.shape
    w1_all, b1_all, w2_all, b2_all, out_dims = _pack_head_params(params)
    hid = int(w1_all.shape[1])
    odim = int(sum(out_dims))

    Hp = _round_up(H, LANE)
    hidp = _round_up(hid, LANE)
    Cp = _round_up(odim, LANE)
    tm = min(512, _round_up(N, 8))
    Np = _round_up(N, tm)

    g_packed = jnp.concatenate(
        [gaussians["xyz"], gaussians["rot"], gaussians["color"],
         gaussians["scale"], gaussians["opacity"]], axis=-1)     # (N, 14)

    xp = _pad2d(h.astype(compute_dtype), Np, Hp)
    gp = _pad2d(g_packed.astype(jnp.float32), Np, Cp)
    w1p = _pad2d(w1_all.astype(compute_dtype), Hp, hidp)
    b1p = _pad2d(b1_all.reshape(1, -1).astype(jnp.float32), 1, hidp)
    w2p = _pad2d(w2_all.astype(compute_dtype), hidp, Cp)
    b2p = _pad2d(b2_all.reshape(1, -1).astype(jnp.float32), 1, Cp)
    fac, lo, hi, rotm = _update_vectors(out_dims, Cp)

    isz = xp.dtype.itemsize
    est = (2 * (tm * Hp * isz + tm * Cp * 4) + Hp * hidp * isz + hidp * Cp * isz
           + 6 * Cp * 4 + hidp * 4 + 2 * tm * Cp * 4)
    vmem_limit = int(min(48 * 2**20, max(4 * est, 8 * 2**20)))

    out = pl.pallas_call(
        functools.partial(_heads_kernel, compute_dtype=compute_dtype),
        out_shape=jax.ShapeDtypeStruct((Np, Cp), jnp.float32),
        grid=(Np // tm,),
        in_specs=[
            pl.BlockSpec((tm, Hp), lambda i: (i, 0)),
            pl.BlockSpec((Hp, hidp), lambda i: (0, 0)),
            pl.BlockSpec((1, hidp), lambda i: (0, 0)),
            pl.BlockSpec((hidp, Cp), lambda i: (0, 0)),
            pl.BlockSpec((1, Cp), lambda i: (0, 0)),
            pl.BlockSpec((tm, Cp), lambda i: (i, 0)),
            pl.BlockSpec((1, Cp), lambda i: (0, 0)),
            pl.BlockSpec((1, Cp), lambda i: (0, 0)),
            pl.BlockSpec((1, Cp), lambda i: (0, 0)),
            pl.BlockSpec((1, Cp), lambda i: (0, 0)),
        ],
        out_specs=pl.BlockSpec((tm, Cp), lambda i: (i, 0)),
        compiler_params=pltpu.CompilerParams(
            dimension_semantics=("parallel",),
            vmem_limit_bytes=vmem_limit),
    )(xp, w1p, b1p, w2p, b2p, gp, fac, lo, hi, rotm)

    out = out[:N, :odim]
    offs = np.cumsum([0] + list(out_dims))
    keys = ("xyz", "rot", "color", "scale", "opacity")
    return {k: out[:, int(offs[i]):int(offs[i + 1])] for i, k in enumerate(keys)}


# ---------------------------------------------------------------------------
# Plain-JAX glue: feature concat + GCN graph aggregation (sparse scatter-add)
# ---------------------------------------------------------------------------
def build_features(gaussians, x):
    pos = gaussians["xyz"]
    pos_emb = jnp.concatenate(
        [jnp.sin(pos[..., 0:1] * 10.0),
         jnp.sin(pos[..., 1:2] * 20.0),
         jnp.sin(pos[..., 2:3] * 30.0)], axis=-1)
    return jnp.concatenate(
        [x, pos_emb, gaussians["rot"], gaussians["color"],
         gaussians["scale"], gaussians["opacity"]], axis=-1)


def gcn_aggregate(x, edge_index, num_nodes):
    """Symmetric-normalized adjacency (with self loops) propagation: A_hat @ x."""
    # TODO(synk): data-dependent scatter-add stays in JAX; an on-core version would need a
    # scalar-prefetch Pallas gather kernel over a CSR neighbor table.
    x = x.astype(jnp.float32)
    src = edge_index[0]
    dst = edge_index[1]
    loop = jnp.arange(num_nodes, dtype=src.dtype)
    src = jnp.concatenate([src, loop])
    dst = jnp.concatenate([dst, loop])
    deg = jax.ops.segment_sum(jnp.ones_like(dst, jnp.float32), dst,
                              num_segments=num_nodes)
    dinv = jnp.where(deg > 0, lax.rsqrt(deg), 0.0)
    coef = (dinv[src] * dinv[dst])[:, None]
    return jax.ops.segment_sum(x[src] * coef, dst, num_segments=num_nodes)


# ---------------------------------------------------------------------------
# Full forward (Pallas path)
# ---------------------------------------------------------------------------
def gaussian_updater_forward(gaussians, x, edge_index, params,
                             *, compute_dtype=jnp.bfloat16):
    num_nodes = x.shape[0]
    h = build_features(gaussians, x)
    for name in ("gcn1", "gcn2", "gcn3"):
        w, b = params[name]
        agg = gcn_aggregate(h, edge_index, num_nodes)          # A_hat @ h
        h = linear_pallas(agg, w, b, apply_relu=True,          # relu(A_hat h W + b)
                          compute_dtype=compute_dtype, out_dtype=compute_dtype)
    return heads_update_pallas(h, gaussians, params, compute_dtype=compute_dtype)


# ---------------------------------------------------------------------------
# Deterministic parameter construction (matches nn.Module __init__ shapes)
# ---------------------------------------------------------------------------
def _linear_init(key, fan_in, fan_out):
    kw, kb = jax.random.split(key)
    bound = 1.0 / math.sqrt(fan_in)
    w = jax.random.uniform(kw, (fan_in, fan_out), jnp.float32, -bound, bound)
    b = jax.random.uniform(kb, (fan_out,), jnp.float32, -bound, bound)
    return w, b


def init_params(key, input_dim, hidden_dim=128, output_color_dim=3):
    ks = jax.random.split(key, 8)
    params = {
        "gcn1": _linear_init(ks[0], input_dim, hidden_dim),
        "gcn2": _linear_init(ks[1], hidden_dim, hidden_dim),
        "gcn3": _linear_init(ks[2], hidden_dim, hidden_dim),
    }
    head_dims = {"fc_position": 3, "fc_rotation": 4, "fc_color": output_color_dim,
                 "fc_scale": 3, "fc_opacity": 1}
    for k, (name, od) in zip(ks[3:], head_dims.items()):
        k1, k2 = jax.random.split(k)
        w1, b1 = _linear_init(k1, hidden_dim, 64)
        w2, b2 = _linear_init(k2, 64, od)
        params[name] = (w1, b1, w2, b2)
    return params


# ---------------------------------------------------------------------------
# Pure-JAX f32 reference (same GCNConv semantics) for correctness check
# ---------------------------------------------------------------------------
def _ref_forward(gaussians, x, edge_index, params):
    num_nodes = x.shape[0]
    h = build_features(gaussians, x)
    for name in ("gcn1", "gcn2", "gcn3"):
        w, b = params[name]
        h = jax.nn.relu(gcn_aggregate(h, edge_index, num_nodes) @ w + b)

    def head(name):
        w1, b1, w2, b2 = params[name]
        return jax.nn.relu(h @ w1 + b1) @ w2 + b2

    new_rot = gaussians["rot"] + head("fc_rotation")
    norm = jnp.maximum(jnp.linalg.norm(new_rot, axis=-1, keepdims=True), 1e-12)
    return {
        "xyz": gaussians["xyz"] + head("fc_position") * 0.1,
        "rot": new_rot / norm,
        "color": jnp.clip(gaussians["color"] + head("fc_color"), 0.0, 1.0),
        "scale": jnp.clip(gaussians["scale"] + head("fc_scale") * 0.1, 1e-6, 1000.0),
        "opacity": jnp.clip(gaussians["opacity"] + head("fc_opacity"), 0.0, 1.0),
    }


# ---------------------------------------------------------------------------
if __name__ == "__main__":
    key = jax.random.PRNGKey(0)
    k_feat, k_pos, k_rot, k_col, k_scl, k_op, k_edge, k_par = jax.random.split(key, 8)

    num_nodes = 64
    num_edges = 256
    feat_dim = 288          # x is (N, 288) per the module docstring
    hidden_dim = 128

    x = jax.random.normal(k_feat, (num_nodes, feat_dim), jnp.float32)
    gaussians = {
        "xyz": jax.random.normal(k_pos, (num_nodes, 3), jnp.float32),
        "rot": jax.random.normal(k_rot, (num_nodes, 4), jnp.float32),
        "color": jax.random.uniform(k_col, (num_nodes, 3), jnp.float32),
        "scale": jax.random.uniform(k_scl, (num_nodes, 3), jnp.float32, 0.01, 0.5),
        "opacity": jax.random.uniform(k_op, (num_nodes, 1), jnp.float32),
    }
    edge_index = jax.random.randint(k_edge, (2, num_edges), 0, num_nodes, jnp.int32)

    input_dim = feat_dim + 3 + 4 + 3 + 3 + 1   # concat dim actually seen by gcn1
    params = init_params(k_par, input_dim, hidden_dim)

    ref = jax.block_until_ready(_ref_forward(gaussians, x, edge_index, params))

    # f32 Pallas path: near-exact vs reference.
    out_f32 = jax.block_until_ready(
        gaussian_updater_forward(gaussians, x, edge_index, params,
                                 compute_dtype=jnp.float32))
    for k in ref:
        np.testing.assert_allclose(np.asarray(out_f32[k]), np.asarray(ref[k]),
                                   rtol=2e-3, atol=2e-3)

    # bf16 Pallas path (default / MXU-friendly): looser tolerance.
    out_bf16 = jax.block_until_ready(
        gaussian_updater_forward(gaussians, x, edge_index, params))
    for k in ref:
        np.testing.assert_allclose(np.asarray(out_bf16[k]), np.asarray(ref[k]),
                                   rtol=5e-2, atol=5e-2)

    print("KERNEL_OK")
</pallas_src>

<mosaic_0001>
module attributes {stable_mosaic.version = 11 : i64} {
  func.func @_linear_kernel(%arg0: i32, %arg1: i32, %arg2: i32, %arg3: memref<64x384xf32, #tpu.memory_space<vmem>>, %arg4: memref<384x128xf32, #tpu.memory_space<vmem>>, %arg5: memref<1x128xf32, #tpu.memory_space<vmem>>, %arg6: memref<64x128xf32, #tpu.memory_space<vmem>>, %arg7: memref<64x128xf32, #tpu.memory_space<vmem>>) attributes {dimension_semantics = [#tpu.dimension_semantics<parallel>, #tpu.dimension_semantics<parallel>, #tpu.dimension_semantics<arbitrary>], iteration_bounds = array<i64: 1, 1, 1>, scalar_prefetch = 0 : i64, scratch_operands = 1 : i64, tpu.core_type = #tpu.core_type<tc>, window_params = [{transform_indices = @transform_0, window_bounds = array<i64: 64, 384>}, {transform_indices = @transform_1, window_bounds = array<i64: 384, 128>}, {transform_indices = @transform_2, window_bounds = array<i64: 1, 128>}, {transform_indices = @transform_3, window_bounds = array<i64: 64, 128>}]} {
    %c0_i32 = arith.constant 0 : i32
    %0 = arith.cmpi eq, %arg2, %c0_i32 : i32
    %1 = arith.extui %0 : i1 to i32
    %c0_i32_0 = arith.constant 0 : i32
    %2 = arith.cmpi ne, %1, %c0_i32_0 : i32
    scf.if %2 {
      %cst_10 = arith.constant 0.000000e+00 : f32
      %12 = vector.broadcast %cst_10 : f32 to vector<64x128xf32>
      %c0_11 = arith.constant 0 : index
      %c0_12 = arith.constant 0 : index
      %13 = vector.load %arg7[%c0_11, %c0_12] : memref<64x128xf32, #tpu.memory_space<vmem>>, vector<64x128xf32>
      tpu.vector_store %arg7[%c0_11, %c0_12], %12 {strides = array<i32>} : memref<64x128xf32, #tpu.memory_space<vmem>>, vector<64x128xf32>,
    } else {
    }
    %c0 = arith.constant 0 : index
    %c0_1 = arith.constant 0 : index
    %3 = vector.load %arg7[%c0, %c0_1] : memref<64x128xf32, #tpu.memory_space<vmem>>, vector<64x128xf32>
    %c0_2 = arith.constant 0 : index
    %c0_3 = arith.constant 0 : index
    %4 = vector.load %arg3[%c0_2, %c0_3] : memref<64x384xf32, #tpu.memory_space<vmem>>, vector<64x384xf32>
    %c0_4 = arith.constant 0 : index
    %c0_5 = arith.constant 0 : index
    %5 = vector.load %arg4[%c0_4, %c0_5] : memref<384x128xf32, #tpu.memory_space<vmem>>, vector<384x128xf32>
    %cst = arith.constant dense<0.000000e+00> : vector<64x128xf32>
    %6 = tpu.matmul %4, %5, %cst {dimension_numbers = #tpu.dot_dimension_numbers<[1], [0], [0], [1], [0, 0, 1, 1], [], []>} : vector<64x384xf32>, vector<384x128xf32>, vector<64x128xf32> -> vector<64x128xf32>
    %7 = arith.addf %3, %6 : vector<64x128xf32>
    %c0_6 = arith.constant 0 : index
    %c0_7 = arith.constant 0 : index
    %8 = vector.load %arg7[%c0_6, %c0_7] : memref<64x128xf32, #tpu.memory_space<vmem>>, vector<64x128xf32>
    tpu.vector_store %arg7[%c0_6, %c0_7], %7 {strides = array<i32>} : memref<64x128xf32, #tpu.memory_space<vmem>>, vector<64x128xf32>,
    %c0_i32_8 = arith.constant 0 : i32
    %9 = arith.cmpi eq, %arg2, %c0_i32_8 : i32
    %10 = arith.extui %9 : i1 to i32
    %c0_i32_9 = arith.constant 0 : i32
    %11 = arith.cmpi ne, %10, %c0_i32_9 : i32
    scf.if %11 {
      %c0_10 = arith.constant 0 : index
      %c0_11 = arith.constant 0 : index
      %12 = vector.load %arg7[%c0_10, %c0_11] : memref<64x128xf32, #tpu.memory_space<vmem>>, vector<64x128xf32>
      %c0_12 = arith.constant 0 : index
      %c0_13 = arith.constant 0 : index
      %13 = vector.load %arg5[%c0_12, %c0_13] : memref<1x128xf32, #tpu.memory_space<vmem>>, vector<1x128xf32>
      %14 = vector.broadcast %13 : vector<1x128xf32> to vector<64x128xf32>
      %15 = arith.addf %12, %14 : vector<64x128xf32>
      %cst_14 = arith.constant 0.000000e+00 : f32
      %16 = vector.broadcast %cst_14 : f32 to vector<64x128xf32>
      %17 = arith.maximumf %15, %16 : vector<64x128xf32>
      %c0_15 = arith.constant 0 : index
      %c0_16 = arith.constant 0 : index
      %18 = vector.load %arg6[%c0_15, %c0_16] : memref<64x128xf32, #tpu.memory_space<vmem>>, vector<64x128xf32>
      tpu.vector_store %arg6[%c0_15, %c0_16], %17 {strides = array<i32>} : memref<64x128xf32, #tpu.memory_space<vmem>>, vector<64x128xf32>,
    } else {
    }
    return
  }
  func.func @transform_0(%arg0: i32, %arg1: i32, %arg2: i32) -> (i32, i32) {
    %c0_i32 = arith.constant 0 : i32
    return %arg0, %arg2 : i32, i32
  }
  func.func @transform_1(%arg0: i32, %arg1: i32, %arg2: i32) -> (i32, i32) {
    %c0_i32 = arith.constant 0 : i32
    return %arg2, %arg1 : i32, i32
  }
  func.func @transform_2(%arg0: i32, %arg1: i32, %arg2: i32) -> (i32, i32) {
    %c0_i32 = arith.constant 0 : i32
    %c0_i32_0 = arith.constant 0 : i32
    return %c0_i32, %arg1 : i32, i32
  }
  func.func @transform_3(%arg0: i32, %arg1: i32, %arg2: i32) -> (i32, i32) {
    %c0_i32 = arith.constant 0 : i32
    return %arg0, %arg1 : i32, i32
  }
}

</mosaic_0001>

<llo_original>
// kernel: tpu_custom_call.1
$region0: #{tpu_custom_call.1}
  #allocation0 [shape = 'u32[]', space=smem, size = 0x4, offset = 0x4, fixed_abs, tag = 'smem constant byte address 0x4 - core index']
  #allocation1 [shape = 'u32[144,128]{1,0:T(1,128)}', space=vmem, size = 0x12000, scoped, tag = 'internal scratch']
  #allocation2 [shape = 'f32[64,128]{1,0:T(8,128)}', space=vmem, size = 0x8000, scoped, tag = 'scratch operand']
  %s0 = inlined_call_operand.hbm [shape: f32[64,384], index: 0, kind: input, shape index: {}]
  %s1 = inlined_call_operand.hbm [shape: f32[384,128], index: 1, kind: input, shape index: {}]
  %s2 = inlined_call_operand.vmem [shape: f32[1,128], index: 2, kind: input, shape index: {}]
  %s3 = inlined_call_operand.hbm [shape: f32[64,128], index: 3, kind: output, shape index: {}]
  %s4 = sld [smem:[#allocation0]]
  $region38: #{tpu_custom_call.1} parent=0
    _
  %s6 = ssub.s32 1, %s4
  %s7 = scalar_select 0, %s6, %s4
  $region1: #{tpu_custom_call.1} parent=0
    #allocation3 [shape = 'u8[98304]{0}', space=vmem, size = 0x18000, scoped, tag = 'input window, operand 0, single buffered']
    #allocation4 [shape = 's32[1]{0}', space=sflag, size = 0x4, scoped, tag = 'scoped memory for tpu_custom_call.1']
    #allocation5 [shape = 's32[1]{0}', space=sflag, size = 0x4, scoped, tag = 'scoped memory for tpu_custom_call.1']
    #allocation6 [shape = 'u8[196608]{0}', space=vmem, size = 0x30000, scoped, tag = 'input window, operand 1, single buffered']
    #allocation7 [shape = 's32[1]{0}', space=sflag, size = 0x4, scoped, tag = 'scoped memory for tpu_custom_call.1']
    #allocation8 [shape = 'u8[32768]{0}', space=vmem, size = 0x8000, scoped, tag = 'output window, operand 0, single buffered']
    %8 = vsyncpa [#allocation4], 0
    %9 = vsyncpa [#allocation7], 0
    %10 = vsyncpa [#allocation5], 0
    // Predicated region
    $region2: #{tpu_custom_call.1} parent=1 // pred_check
      _
    $region3: #{tpu_custom_call.1} parent=1 // pred_check_branch
      %12 = sbr.rel (0) target = $region5
    $region4: #{tpu_custom_call.1} parent=1 // pred_region
      %s14 = ssub.s32 3072, 3072
      %15 = vsyncadd [#allocation4], %s14
      %s16 = sshll.u32 [#allocation3], 4
      %s17 = int_to_ptr.vmem [resolvable:$true] %s16
      %22 = dma.hbm_to_vmem [thread:$0]  %s0, 3072, %s17, [#allocation4], 384, 384, 24
    $region5: #{tpu_custom_call.1} parent=1 // pred_fallthru
      _
    // Predicated region
    $region6: #{tpu_custom_call.1} parent=1 // pred_check
      _
    $region7: #{tpu_custom_call.1} parent=1 // pred_check_branch
      %24 = sbr.rel (0) target = $region9
    $region8: #{tpu_custom_call.1} parent=1 // pred_region
      %s26 = ssub.s32 6144, 6144
      %27 = vsyncadd [#allocation7], %s26
      %s28 = sshll.u32 [#allocation6], 4
      %s29 = int_to_ptr.vmem [resolvable:$true] %s28
      %34 = dma.hbm_to_vmem [thread:$0]  %s1, 6144, %s29, [#allocation7], 128, 128, 8
    $region9: #{tpu_custom_call.1} parent=1 // pred_fallthru
      _
    // Predicated region
    $region10: #{tpu_custom_call.1} parent=1 // pred_check
      _
    $region11: #{tpu_custom_call.1} parent=1 // pred_check_branch
      %36 = sbr.rel (0) target = $region13
    $region12: #{tpu_custom_call.1} parent=1 // pred_region
      _
    $region13: #{tpu_custom_call.1} parent=1 // pred_fallthru
      _
    // Predicated region
    $region14: #{tpu_custom_call.1} parent=1 // pred_check
      _
    $region15: #{tpu_custom_call.1} parent=1 // pred_check_branch
      %38 = sbr.rel (0) target = $region17
    $region16: #{tpu_custom_call.1} parent=1 // pred_region
      %39 = dma.done [#allocation4], 3072
    $region17: #{tpu_custom_call.1} parent=1 // pred_fallthru
      _
    // Predicated region
    $region18: #{tpu_custom_call.1} parent=1 // pred_check
      _
    $region19: #{tpu_custom_call.1} parent=1 // pred_check_branch
      %41 = sbr.rel (0) target = $region21
    $region20: #{tpu_custom_call.1} parent=1 // pred_region
      %42 = dma.done [#allocation7], 6144
    $region21: #{tpu_custom_call.1} parent=1 // pred_fallthru
      _
    %p43 = scmp.eq.s32.totalorder 0, 0
    // Predicated region
    $region22: #{tpu_custom_call.1} parent=1 // pred_check
      %p44 = pneg %p43
    $region23: #{tpu_custom_call.1} parent=1 // pred_check_branch
      %46 = sbr.rel (%p44) target = $region25
    $region24: #{tpu_custom_call.1} parent=1 // pred_region
      %47 = vst [vmem:[#allocation2] sm:$0xff] 0.0
      %48 = vst [vmem:[#allocation2 + $0x8] sm:$0xff] 0.0
      %49 = vst [vmem:[#allocation2 + $0x10] sm:$0xff] 0.0
      %50 = vst [vmem:[#allocation2 + $0x18] sm:$0xff] 0.0
      %51 = vst [vmem:[#allocation2 + $0x20] sm:$0xff] 0.0
      %52 = vst [vmem:[#allocation2 + $0x28] sm:$0xff] 0.0
      %53 = vst [vmem:[#allocation2 + $0x30] sm:$0xff] 0.0
      %54 = vst [vmem:[#allocation2 + $0x38] sm:$0xff] 0.0
    $region25: #{tpu_custom_call.1} parent=1 // pred_fallthru
      _
    %v55 = vld [vmem:[#allocation2] sm:$0xff]
    %v56 = vld [vmem:[#allocation2 + $0x8] sm:$0xff]
    %v57 = vld [vmem:[#allocation2 + $0x10] sm:$0xff]
    %v58 = vld [vmem:[#allocation2 + $0x18] sm:$0xff]
    %v59 = vld [vmem:[#allocation2 + $0x20] sm:$0xff]
    %v60 = vld [vmem:[#allocation2 + $0x28] sm:$0xff]
    %v61 = vld [vmem:[#allocation2 + $0x30] sm:$0xff]
    %v62 = vld [vmem:[#allocation2 + $0x38] sm:$0xff]
    %v63 = vld [vmem:[#allocation3] sm:$0xff]
    %v64 = vld [vmem:[#allocation3 + $0x8] sm:$0xff]
    %v65 = vld [vmem:[#allocation3 + $0x10] sm:$0xff]
    %v66 = vld [vmem:[#allocation3 + $0x18] sm:$0xff]
    %v67 = vld [vmem:[#allocation3 + $0x20] sm:$0xff]
    %v68 = vld [vmem:[#allocation3 + $0x28] sm:$0xff]
    %v69 = vld [vmem:[#allocation3 + $0x30] sm:$0xff]
    %v70 = vld [vmem:[#allocation3 + $0x38] sm:$0xff]
    %v71 = vld [vmem:[#allocation3 + $0x40] sm:$0xff]
    %v72 = vld [vmem:[#allocation3 + $0x48] sm:$0xff]
    %v73 = vld [vmem:[#allocation3 + $0x50] sm:$0xff]
    %v74 = vld [vmem:[#allocation3 + $0x58] sm:$0xff]
    %v75 = vld [vmem:[#allocation3 + $0x60] sm:$0xff]
    %v76 = vld [vmem:[#allocation3 + $0x68] sm:$0xff]
    %v77 = vld [vmem:[#allocation3 + $0x70] sm:$0xff]
    %v78 = vld [vmem:[#allocation3 + $0x78] sm:$0xff]
    %v79 = vld [vmem:[#allocation3 + $0x80] sm:$0xff]
    %v80 = vld [vmem:[#allocation3 + $0x88] sm:$0xff]
    %v81 = vld [vmem:[#allocation3 + $0x90] sm:$0xff]
    %v82 = vld [vmem:[#allocation3 + $0x98] sm:$0xff]
    %v83 = vld [vmem:[#allocation3 + $0xa0] sm:$0xff]
    %v84 = vld [vmem:[#allocation3 + $0xa8] sm:$0xff]
    %v85 = vld [vmem:[#allocation3 + $0xb0] sm:$0xff]
    %v86 = vld [vmem:[#allocation3 + $0xb8] sm:$0xff]
    %v87 = vld [vmem:[#allocation6] sm:$0xff]
    %v88 = vld [vmem:[#allocation6 + $0x8] sm:$0xff]
    %v89 = vld [vmem:[#allocation6 + $0x10] sm:$0xff]
    %v90 = vld [vmem:[#allocation6 + $0x18] sm:$0xff]
    %v91 = vld [vmem:[#allocation6 + $0x20] sm:$0xff]
    %v92 = vld [vmem:[#allocation6 + $0x28] sm:$0xff]
    %v93 = vld [vmem:[#allocation6 + $0x30] sm:$0xff]
    %v94 = vld [vmem:[#allocation6 + $0x38] sm:$0xff]
    %v95 = vld [vmem:[#allocation6 + $0x40] sm:$0xff]
    %v96 = vld [vmem:[#allocation6 + $0x48] sm:$0xff]
    %v97 = vld [vmem:[#allocation6 + $0x50] sm:$0xff]
    %v98 = vld [vmem:[#allocation6 + $0x58] sm:$0xff]
    %v99 = vld [vmem:[#allocation6 + $0x60] sm:$0xff]
    %v100 = vld [vmem:[#allocation6 + $0x68] sm:$0xff]
    %v101 = vld [vmem:[#allocation6 + $0x70] sm:$0xff]
    %v102 = vld [vmem:[#allocation6 + $0x78] sm:$0xff]
    %v103 = vld [vmem:[#allocation6 + $0x80] sm:$0xff]
    %v104 = vld [vmem:[#allocation6 + $0x88] sm:$0xff]
    %v105 = vld [vmem:[#allocation6 + $0x90] sm:$0xff]
    %v106 = vld [vmem:[#allocation6 + $0x98] sm:$0xff]
    %v107 = vld [vmem:[#allocation6 + $0xa0] sm:$0xff]
    %v108 = vld [vmem:[#allocation6 + $0xa8] sm:$0xff]
    %v109 = vld [vmem:[#allocation6 + $0xb0] sm:$0xff]
    %v110 = vld [vmem:[#allocation6 + $0xb8] sm:$0xff]
    %v111 = vld [vmem:[#allocation6 + $0xc0] sm:$0xff]
    %v112 = vld [vmem:[#allocation6 + $0xc8] sm:$0xff]
    %v113 = vld [vmem:[#allocation6 + $0xd0] sm:$0xff]
    %v114 = vld [vmem:[#allocation6 + $0xd8] sm:$0xff]
    %v115 = vld [vmem:[#allocation6 + $0xe0] sm:$0xff]
    %v116 = vld [vmem:[#allocation6 + $0xe8] sm:$0xff]
    %v117 = vld [vmem:[#allocation6 + $0xf0] sm:$0xff]
    %v118 = vld [vmem:[#allocation6 + $0xf8] sm:$0xff]
    %v119 = vld [vmem:[#allocation6 + $0x100] sm:$0xff]
    %v120 = vld [vmem:[#allocation6 + $0x108] sm:$0xff]
    %v121 = vld [vmem:[#allocation6 + $0x110] sm:$0xff]
    %v122 = vld [vmem:[#allocation6 + $0x118] sm:$0xff]
    %v123 = vld [vmem:[#allocation6 + $0x120] sm:$0xff]
    %v124 = vld [vmem:[#allocation6 + $0x128] sm:$0xff]
    %v125 = vld [vmem:[#allocation6 + $0x130] sm:$0xff]
    %v126 = vld [vmem:[#allocation6 + $0x138] sm:$0xff]
    %v127 = vld [vmem:[#allocation6 + $0x140] sm:$0xff]
    %v128 = vld [vmem:[#allocation6 + $0x148] sm:$0xff]
    %v129 = vld [vmem:[#allocation6 + $0x150] sm:$0xff]
    %v130 = vld [vmem:[#allocation6 + $0x158] sm:$0xff]
    %v131 = vld [vmem:[#allocation6 + $0x160] sm:$0xff]
    %v132 = vld [vmem:[#allocation6 + $0x168] sm:$0xff]
    %v133 = vld [vmem:[#allocation6 + $0x170] sm:$0xff]
    %v134 = vld [vmem:[#allocation6 + $0x178] sm:$0xff]
    %135 = vmatprep.subr.mxu0 0.0
    %136 = vmatpush1.msra.mxu0 %v87
    %137 = vmatprep.subr.mxu0 0.0
    %138 = vmatpush1.msra.mxu0 %v88
    %139 = vmatprep.subr.mxu0 0.0
    %140 = vmatpush1.msra.mxu0 %v89
    %141 = vmatprep.subr.mxu0 0.0
    %142 = vmatpush1.msra.mxu0 %v90
    %143 = vmatprep.subr.mxu0 0.0
    %144 = vmatpush1.msra.mxu0 %v91
    %145 = vmatprep.subr.mxu0 0.0
    %146 = vmatpush1.msra.mxu0 %v92
    %147 = vmatprep.subr.mxu0 0.0
    %148 = vmatpush1.msra.mxu0 %v93
    %149 = vmatprep.subr.mxu0 0.0
    %150 = vmatpush1.msra.mxu0 %v94
    %151 = vmatprep.subr.mxu0 0.0
    %152 = vmatpush1.msra.mxu0 %v95
    %153 = vmatprep.subr.mxu0 0.0
    %154 = vmatpush1.msra.mxu0 %v96
    %155 = vmatprep.subr.mxu0 0.0
    %156 = vmatpush1.msra.mxu0 %v97
    %157 = vmatprep.subr.mxu0 0.0
    %158 = vmatpush1.msra.mxu0 %v98
    %159 = vmatprep.subr.mxu0 0.0
    %160 = vmatpush1.msra.mxu0 %v99
    %161 = vmatprep.subr.mxu0 0.0
    %162 = vmatpush1.msra.mxu0 %v100
    %163 = vmatprep.subr.mxu0 0.0
    %164 = vmatpush1.msra.mxu0 %v101
    %165 = vmatprep.subr.mxu0 0.0
    %166 = vmatpush1.msra.mxu0 %v102
    %167 = vmatprep.subr.mxu0 0.0
    %168 = vmatpush1.msra.mxu0 %v103
    %169 = vmatprep.subr.mxu0 0.0
    %170 = vmatpush1.msra.mxu0 %v104
    %171 = vmatprep.subr.mxu0 0.0
    %172 = vmatpush1.msra.mxu0 %v105
    %173 = vmatprep.subr.mxu0 0.0
    %174 = vmatpush1.msra.mxu0 %v106
    %175 = vmatprep.subr.mxu0 0.0
    %176 = vmatpush1.msra.mxu0 %v107
    %177 = vmatprep.subr.mxu0 0.0
    %178 = vmatpush1.msra.mxu0 %v108
    %179 = vmatprep.subr.mxu0 0.0
    %180 = vmatpush1.msra.mxu0 %v109
    %181 = vmatprep.subr.mxu0 0.0
    %182 = vmatpush1.msra.mxu0 %v110
    %183 = vmatprep.subr.mxu0 0.0
    %184 = vmatpush1.msra.mxu0 %v111
    %185 = vmatprep.subr.mxu0 0.0
    %186 = vmatpush1.msra.mxu0 %v112
    %187 = vmatprep.subr.mxu0 0.0
    %188 = vmatpush1.msra.mxu0 %v113
    %189 = vmatprep.subr.mxu0 0.0
    %190 = vmatpush1.msra.mxu0 %v114
    %191 = vmatprep.subr.mxu0 0.0
    %192 = vmatpush1.msra.mxu0 %v115
    %193 = vmatprep.subr.mxu0 0.0
    %194 = vmatpush1.msra.mxu0 %v116
    %195 = vmatprep.subr.mxu0 0.0
    %196 = vmatpush1.msra.mxu0 %v117
    %197 = vmatprep.subr.mxu0 0.0
    %198 = vmatpush1.msra.mxu0 %v118
    %199 = vmatprep.mubr.f32.mxu0 %v64
    %200 = vmatmul.mubr.f32.gmra.mrb[0].mxu0 %v63
    %v201 = vpop.f32.mrb[0].mxu0
    %v202 = vadd.f32 0.0, %v201
    %v203 = vpop.f32.mrb[0].mxu0
    %204 = vmatprep.mubr.f32.mxu0 %v67
    %205 = vmatmul.mubr.f32.gmra.mrb[0].mxu0 %v66
    %v206 = vpop.f32.mrb[0].mxu0
    %v207 = vadd.f32 0.0, %v206
    %v208 = vpop.f32.mrb[0].mxu0
    %209 = vmatprep.mubr.f32.mxu0 %v70
    %210 = vmatmul.mubr.f32.gmra.mrb[0].mxu0 %v69
    %v211 = vpop.f32.mrb[0].mxu0
    %v212 = vadd.f32 0.0, %v211
    %v213 = vpop.f32.mrb[0].mxu0
    %214 = vmatprep.mubr.f32.mxu0 %v73
    %215 = vmatmul.mubr.f32.gmra.mrb[0].mxu0 %v72
    %v216 = vpop.f32.mrb[0].mxu0
    %v217 = vadd.f32 0.0, %v216
    %v218 = vpop.f32.mrb[0].mxu0
    %219 = vmatprep.mubr.f32.mxu0 %v76
    %220 = vmatmul.mubr.f32.gmra.mrb[0].mxu0 %v75
    %v221 = vpop.f32.mrb[0].mxu0
    %v222 = vadd.f32 0.0, %v221
    %v223 = vpop.f32.mrb[0].mxu0
    %224 = vmatprep.mubr.f32.mxu0 %v79
    %225 = vmatmul.mubr.f32.gmra.mrb[0].mxu0 %v78
    %v226 = vpop.f32.mrb[0].mxu0
    %v227 = vadd.f32 0.0, %v226
    %v228 = vpop.f32.mrb[0].mxu0
    %229 = vmatprep.mubr.f32.mxu0 %v82
    %230 = vmatmul.mubr.f32.gmra.mrb[0].mxu0 %v81
    %v231 = vpop.f32.mrb[0].mxu0
    %v232 = vadd.f32 0.0, %v231
    %v233 = vpop.f32.mrb[0].mxu0
    %234 = vmatprep.mubr.f32.mxu0 %v85
    %235 = vmatmul.mubr.f32.gmra.mrb[0].mxu0 %v84
    %v236 = vpop.f32.mrb[0].mxu0
    %v237 = vadd.f32 0.0, %v236
    %v238 = vpop.f32.mrb[0].mxu0
    %239 = vdwg.mxu0
    %240 = vmatprep.subr.mxu0 0.0
    %241 = vmatpush1.msra.mxu0 %v119
    %242 = vmatprep.subr.mxu0 0.0
    %243 = vmatpush1.msra.mxu0 %v120
    %244 = vmatprep.subr.mxu0 0.0
    %245 = vmatpush1.msra.mxu0 %v121
    %246 = vmatprep.subr.mxu0 0.0
    %247 = vmatpush1.msra.mxu0 %v122
    %248 = vmatprep.subr.mxu0 0.0
    %249 = vmatpush1.msra.mxu0 %v123
    %250 = vmatprep.subr.mxu0 0.0
    %251 = vmatpush1.msra.mxu0 %v124
    %252 = vmatprep.subr.mxu0 0.0
    %253 = vmatpush1.msra.mxu0 %v125
    %254 = vmatprep.subr.mxu0 0.0
    %255 = vmatpush1.msra.mxu0 %v126
    %256 = vmatprep.subr.mxu0 0.0
    %257 = vmatpush1.msra.mxu0 %v127
    %258 = vmatprep.subr.mxu0 0.0
    %259 = vmatpush1.msra.mxu0 %v128
    %260 = vmatprep.subr.mxu0 0.0
    %261 = vmatpush1.msra.mxu0 %v129
    %262 = vmatprep.subr.mxu0 0.0
    %263 = vmatpush1.msra.mxu0 %v130
    %264 = vmatprep.subr.mxu0 0.0
    %265 = vmatpush1.msra.mxu0 %v131
    %266 = vmatprep.subr.mxu0 0.0
    %267 = vmatpush1.msra.mxu0 %v132
    %268 = vmatprep.subr.mxu0 0.0
    %269 = vmatpush1.msra.mxu0 %v133
    %270 = vmatprep.subr.mxu0 0.0
    %271 = vmatpush1.msra.mxu0 %v134
    %272 = vmatprep.subr.mxu0 0.0
    %273 = vmatpush1.msra.mxu0 0.0
    %274 = vmatprep.subr.mxu0 0.0
    %275 = vmatpush1.msra.mxu0 0.0
    %276 = vmatprep.subr.mxu0 0.0
    %277 = vmatpush1.msra.mxu0 0.0
    %278 = vmatprep.subr.mxu0 0.0
    %279 = vmatpush1.msra.mxu0 0.0
    %280 = vmatprep.subr.mxu0 0.0
    %281 = vmatpush1.msra.mxu0 0.0
    %282 = vmatprep.subr.mxu0 0.0
    %283 = vmatpush1.msra.mxu0 0.0
    %284 = vmatprep.subr.mxu0 0.0
    %285 = vmatpush1.msra.mxu0 0.0
    %286 = vmatprep.subr.mxu0 0.0
    %287 = vmatpush1.msra.mxu0 0.0
    %288 = vmatprep.subr.mxu0 0.0
    %289 = vmatpush1.msra.mxu0 0.0
    %290 = vmatprep.subr.mxu0 0.0
    %291 = vmatpush1.msra.mxu0 0.0
    %292 = vmatprep.subr.mxu0 0.0
    %293 = vmatpush1.msra.mxu0 0.0
    %294 = vmatprep.subr.mxu0 0.0
    %295 = vmatpush1.msra.mxu0 0.0
    %296 = vmatprep.subr.mxu0 0.0
    %297 = vmatpush1.msra.mxu0 0.0
    %298 = vmatprep.subr.mxu0 0.0
    %299 = vmatpush1.msra.mxu0 0.0
    %300 = vmatprep.subr.mxu0 0.0
    %301 = vmatpush1.msra.mxu0 0.0
    %302 = vmatprep.subr.mxu0 0.0
    %303 = vmatpush1.msra.mxu0 0.0
    %304 = vmatprep.mubr.f32.mxu0 0.0
    %305 = vmatmul.mubr.f32.gmra.mrb[0].mxu0 %v65
    %v306 = vpop.f32.mrb[0].mxu0
    %v307 = vadd.f32 %v202, %v306
    %v308 = vpop.f32.mrb[0].mxu0
    %309 = vmatprep.mubr.f32.mxu0 0.0
    %310 = vmatmul.mubr.f32.gmra.mrb[0].mxu0 %v68
    %v311 = vpop.f32.mrb[0].mxu0
    %v312 = vadd.f32 %v207, %v311
    %v313 = vpop.f32.mrb[0].mxu0
    %314 = vmatprep.mubr.f32.mxu0 0.0
    %315 = vmatmul.mubr.f32.gmra.mrb[0].mxu0 %v71
    %v316 = vpop.f32.mrb[0].mxu0
    %v317 = vadd.f32 %v212, %v316
    %v318 = vpop.f32.mrb[0].mxu0
    %319 = vmatprep.mubr.f32.mxu0 0.0
    %320 = vmatmul.mubr.f32.gmra.mrb[0].mxu0 %v74
    %v321 = vpop.f32.mrb[0].mxu0
    %v322 = vadd.f32 %v217, %v321
    %v323 = vpop.f32.mrb[0].mxu0
    %324 = vmatprep.mubr.f32.mxu0 0.0
    %325 = vmatmul.mubr.f32.gmra.mrb[0].mxu0 %v77
    %v326 = vpop.f32.mrb[0].mxu0
    %v327 = vadd.f32 %v222, %v326
    %v328 = vpop.f32.mrb[0].mxu0
    %329 = vmatprep.mubr.f32.mxu0 0.0
    %330 = vmatmul.mubr.f32.gmra.mrb[0].mxu0 %v80
    %v331 = vpop.f32.mrb[0].mxu0
    %v332 = vadd.f32 %v227, %v331
    %v333 = vpop.f32.mrb[0].mxu0
    %334 = vmatprep.mubr.f32.mxu0 0.0
    %335 = vmatmul.mubr.f32.gmra.mrb[0].mxu0 %v83
    %v336 = vpop.f32.mrb[0].mxu0
    %v337 = vadd.f32 %v232, %v336
    %v338 = vpop.f32.mrb[0].mxu0
    %339 = vmatprep.mubr.f32.mxu0 0.0
    %340 = vmatmul.mubr.f32.gmra.mrb[0].mxu0 %v86
    %v341 = vpop.f32.mrb[0].mxu0
    %v342 = vadd.f32 %v237, %v341
    %v343 = vpop.f32.mrb[0].mxu0
    %344 = vdwg.mxu0
    %v345 = vadd.f32 %v55, %v307
    %v346 = vadd.f32 %v56, %v312
    %v347 = vadd.f32 %v57, %v317
    %v348 = vadd.f32 %v58, %v322
    %v349 = vadd.f32 %v59, %v327
    %v350 = vadd.f32 %v60, %v332
    %v351 = vadd.f32 %v61, %v337
    %v352 = vadd.f32 %v62, %v342
    %353 = vst [vmem:[#allocation2] sm:$0xff] %v345
    %354 = vst [vmem:[#allocation2 + $0x8] sm:$0xff] %v346
    %355 = vst [vmem:[#allocation2 + $0x10] sm:$0xff] %v347
    %356 = vst [vmem:[#allocation2 + $0x18] sm:$0xff] %v348
    %357 = vst [vmem:[#allocation2 + $0x20] sm:$0xff] %v349
    %358 = vst [vmem:[#allocation2 + $0x28] sm:$0xff] %v350
    %359 = vst [vmem:[#allocation2 + $0x30] sm:$0xff] %v351
    %360 = vst [vmem:[#allocation2 + $0x38] sm:$0xff] %v352
    // Predicated region
    $region26: #{tpu_custom_call.1} parent=1 // pred_check
      %p361 = pneg %p43
    $region27: #{tpu_custom_call.1} parent=1 // pred_check_branch
      %363 = sbr.rel (%p361) target = $region29
    $region28: #{tpu_custom_call.1} parent=1 // pred_region
      %v364 = vld [vmem:[#allocation2] sm:$0xff]
      %v365 = vld [vmem:[#allocation2 + $0x8] sm:$0xff]
      %v366 = vld [vmem:[#allocation2 + $0x10] sm:$0xff]
      %v367 = vld [vmem:[#allocation2 + $0x18] sm:$0xff]
      %v368 = vld [vmem:[#allocation2 + $0x20] sm:$0xff]
      %v369 = vld [vmem:[#allocation2 + $0x28] sm:$0xff]
      %v370 = vld [vmem:[#allocation2 + $0x30] sm:$0xff]
      %v371 = vld [vmem:[#allocation2 + $0x38] sm:$0xff]
      %v372 = vld [vmem:[%s2] sm:$0x1]
      %v374 = vlaneseq
      %v375 = vshrl.u32 %v374, 7
      %v376 = vsub.s32 0, %v375
      %v377 = vrot.slane %v372, %v376
      %v379 = vadd.f32 %v364, %v377
      %v380 = vadd.f32 %v365, %v377
      %v381 = vadd.f32 %v366, %v377
      %v382 = vadd.f32 %v367, %v377
      %v383 = vadd.f32 %v368, %v377
      %v384 = vadd.f32 %v369, %v377
      %v385 = vadd.f32 %v370, %v377
      %v386 = vadd.f32 %v371, %v377
      %v387 = vmax.f32 %v379, 0.0
      %v388 = vmax.f32 %v380, 0.0
      %v389 = vmax.f32 %v381, 0.0
      %v390 = vmax.f32 %v382, 0.0
      %v391 = vmax.f32 %v383, 0.0
      %v392 = vmax.f32 %v384, 0.0
      %v393 = vmax.f32 %v385, 0.0
      %v394 = vmax.f32 %v386, 0.0
      %395 = vst [vmem:[#allocation8] sm:$0xff] %v387
      %396 = vst [vmem:[#allocation8 + $0x8] sm:$0xff] %v388
      %397 = vst [vmem:[#allocation8 + $0x10] sm:$0xff] %v389
      %398 = vst [vmem:[#allocation8 + $0x18] sm:$0xff] %v390
      %399 = vst [vmem:[#allocation8 + $0x20] sm:$0xff] %v391
      %400 = vst [vmem:[#allocation8 + $0x28] sm:$0xff] %v392
      %401 = vst [vmem:[#allocation8 + $0x30] sm:$0xff] %v393
      %402 = vst [vmem:[#allocation8 + $0x38] sm:$0xff] %v394
    $region29: #{tpu_custom_call.1} parent=1 // pred_fallthru
      _
    // Predicated region
    $region30: #{tpu_custom_call.1} parent=1 // pred_check
      _
    $region31: #{tpu_custom_call.1} parent=1 // pred_check_branch
      %404 = sbr.rel (0) target = $region33
    $region32: #{tpu_custom_call.1} parent=1 // pred_region
      %s406 = ssub.s32 1024, 1024
      %407 = vsyncadd [#allocation5], %s406
      %s408 = sshll.u32 [#allocation8], 4
      %s409 = int_to_ptr.vmem [resolvable:$true] %s408
      %414 = dma.vmem_to_hbm [thread:$0]  %s409, 1024, %s3, [#allocation5], 128, 128, 8
    $region33: #{tpu_custom_call.1} parent=1 // pred_fallthru
      _
    // Predicated region
    $region34: #{tpu_custom_call.1} parent=1 // pred_check
      _
    $region35: #{tpu_custom_call.1} parent=1 // pred_check_branch
      %416 = sbr.rel (0) target = $region37
    $region36: #{tpu_custom_call.1} parent=1 // pred_region
      %417 = dma.done [#allocation5], 1024
    $region37: #{tpu_custom_call.1} parent=1 // pred_fallthru
      _
    %418 = vsyncpa [#allocation4], 1
    %419 = vsyncpa [#allocation7], 1
    %420 = vsyncpa [#allocation5], 1

</llo_original>
